<compile_context>
chip_gen: v5e
topology: v5e:2x2
jax: 0.10.0
libtpu: 0.0.40
codegen_flags: <defaults>
</compile_context>

<pallas_src>
import math

import jax
import jax.numpy as jnp
from jax.experimental import pallas as pl
from jax.experimental.pallas import tpu as pltpu


# ----------------------------------------------------------------------------- helpers

def determine_target_rank(dim1, dim2, ratio):
    rank = math.ceil(ratio * (dim1 * dim2) / (dim1 + dim2))
    rank = rank // 8 * 8
    return rank


def _round_up(x, m):
    return (x + m - 1) // m * m


def _pad2d(a, rows, cols):
    return jnp.pad(a, ((0, rows - a.shape[0]), (0, cols - a.shape[1])))


def _nbytes(shape, dtype):
    n = 1
    for d in shape:
        n *= d
    return n * jnp.dtype(dtype).itemsize


# ----------------------------------------------------------------------------- kernel

def _make_fused_mlp_kernel(structure):
    """structure: ('full'|'lowrank') for (gate, up, down). Static Python branching."""
    gate_k, up_k, down_k = structure
    n_gate = 1 if gate_k == "full" else 3
    n_up = 1 if up_k == "full" else 3
    n_down = 1 if down_k == "full" else 3
    n_params = n_gate + n_up + n_down

    def kernel(*refs):
        x_ref = refs[0]                       # (bm, Hp) bf16, resident across j
        params = refs[1:1 + n_params]
        out_ref = refs[1 + n_params]          # (bm, Hp), resident across j
        scratch = refs[2 + n_params:]

        gate_refs = params[:n_gate]
        up_refs = params[n_gate:n_gate + n_up]
        down_refs = params[n_gate + n_up:]

        acc_ref = scratch[0]                  # f32 accumulator (bm, Hp) or (bm, Rd_pad)
        si = 1
        xg_ref = xu_ref = None
        if gate_k == "lowrank":
            xg_ref = scratch[si]; si += 1     # (bm, Rg_pad) bf16, cached x @ Wg1
        if up_k == "lowrank":
            xu_ref = scratch[si]; si += 1     # (bm, Ru_pad) bf16, cached x @ Wu1

        j = pl.program_id(1)

        @pl.when(j == 0)
        def _init():
            acc_ref[...] = jnp.zeros_like(acc_ref)
            if gate_k == "lowrank":
                xg_ref[...] = jnp.dot(
                    x_ref[...], gate_refs[0][...],
                    preferred_element_type=jnp.float32).astype(xg_ref.dtype)
            if up_k == "lowrank":
                xu_ref[...] = jnp.dot(
                    x_ref[...], up_refs[0][...],
                    preferred_element_type=jnp.float32).astype(xu_ref.dtype)

        # gate slice for this intermediate tile (bias per intermediate column -> per tile)
        if gate_k == "full":
            g = jnp.dot(x_ref[...], gate_refs[0][...],
                        preferred_element_type=jnp.float32)
        else:
            g = jnp.dot(xg_ref[...], gate_refs[1][...],
                        preferred_element_type=jnp.float32) + gate_refs[2][...]

        # up slice
        if up_k == "full":
            u = jnp.dot(x_ref[...], up_refs[0][...],
                        preferred_element_type=jnp.float32)
        else:
            u = jnp.dot(xu_ref[...], up_refs[1][...],
                        preferred_element_type=jnp.float32) + up_refs[2][...]

        # silu in f32, cast result to bf16 for the down-projection MXU pass
        h = (jax.nn.silu(g) * u).astype(jnp.bfloat16)

        # accumulate this intermediate tile's contribution (full: into (bm,Hp);
        # lowrank: into the low-rank space (bm,Rd_pad))
        acc_ref[...] += jnp.dot(h, down_refs[0][...],
                                preferred_element_type=jnp.float32)

        @pl.when(j == pl.num_programs(1) - 1)
        def _finalize():
            if down_k == "full":
                out_ref[...] = acc_ref[...].astype(out_ref.dtype)
            else:
                # low-rank bias applied exactly once, after the reduction completes
                r = jnp.dot(acc_ref[...].astype(jnp.bfloat16),
                            down_refs[1][...],
                            preferred_element_type=jnp.float32) + down_refs[2][...]
                out_ref[...] = r.astype(out_ref.dtype)

    return kernel


# ----------------------------------------------------------------------------- builder

def make_llama_mlp(hidden_size, intermediate_size, ratios, key,
                   block_m=256, block_n=512, dtype=jnp.float32):
    """Build deterministic params + (forward, reference) implementing LlamaMLP.forward."""
    assert block_m % 8 == 0, "block_m must be a multiple of 8"
    assert block_n % 128 == 0, "block_n must be a multiple of 128"

    gate_rank = determine_target_rank(hidden_size, intermediate_size, ratios[2])
    up_rank = determine_target_rank(hidden_size, intermediate_size, ratios[3])
    down_rank = determine_target_rank(hidden_size, intermediate_size, ratios[4])

    hp = _round_up(hidden_size, 128)                          # padded hidden (lane dim)
    bn = min(block_n, _round_up(intermediate_size, 128))      # intermediate tile
    ip = _round_up(intermediate_size, bn)                     # padded intermediate

    keys = iter(jax.random.split(key, 16))

    def linear_w(in_f, out_f):
        # nn.Linear weight is (out, in); we store the transpose (in, out), bf16 for MXU.
        lim = 1.0 / math.sqrt(in_f)
        w = jax.random.uniform(next(keys), (in_f, out_f), jnp.float32, -lim, lim)
        return w.astype(jnp.bfloat16)

    def linear_b(in_f, out_f):
        lim = 1.0 / math.sqrt(in_f)
        return jax.random.uniform(next(keys), (1, out_f), jnp.float32, -lim, lim)

    structure = []
    raw = []      # per-projection tuples of unpadded params (for the reference)
    padded = []   # flat, zero-padded kernel params (padding is semantically exact)

    def build_gate_up(in_f, out_f, ratio, rank):
        if ratio == 1:
            w = linear_w(in_f, out_f)
            structure.append("full")
            raw.append((w,))
            padded.append(_pad2d(w, hp, ip))
            return None
        assert rank > 0, "Determine_Target_Rank collapsed to 0 (degenerate factorization)"
        rp = _round_up(rank, 128)
        w1, w2, b2 = linear_w(in_f, rank), linear_w(rank, out_f), linear_b(rank, out_f)
        structure.append("lowrank")
        raw.append((w1, w2, b2))
        padded.extend([_pad2d(w1, hp, rp), _pad2d(w2, rp, ip), _pad2d(b2, 1, ip)])
        return rp

    def build_down(in_f, out_f, ratio, rank):
        if ratio == 1:
            w = linear_w(in_f, out_f)
            structure.append("full")
            raw.append((w,))
            padded.append(_pad2d(w, ip, hp))
            return None
        assert rank > 0, "Determine_Target_Rank collapsed to 0 (degenerate factorization)"
        rp = _round_up(rank, 128)
        w1, w2, b2 = linear_w(in_f, rank), linear_w(rank, out_f), linear_b(rank, out_f)
        structure.append("lowrank")
        raw.append((w1, w2, b2))
        padded.extend([_pad2d(w1, ip, rp), _pad2d(w2, rp, hp), _pad2d(b2, 1, hp)])
        return rp

    gate_rp = build_gate_up(hidden_size, intermediate_size, ratios[2], gate_rank)
    up_rp = build_gate_up(hidden_size, intermediate_size, ratios[3], up_rank)
    down_rp = build_down(intermediate_size, hidden_size, ratios[4], down_rank)

    structure = tuple(structure)
    kernel = _make_fused_mlp_kernel(structure)

    # ------------------------------------------------------------------- forward

    def forward(x):
        b, s, h = x.shape
        assert h == hidden_size
        m = b * s
        bm = min(block_m, _round_up(m, 8))
        mp = _round_up(m, bm)

        x2d = x.reshape(m, h).astype(jnp.bfloat16)
        x_pad = _pad2d(x2d, mp, hp)

        grid = (mp // bm, ip // bn)

        in_specs = [pl.BlockSpec((bm, hp), lambda i, j: (i, 0))]
        blocks = [((bm, hp), jnp.bfloat16)]

        def add_gate_up_specs(kind, rp):
            if kind == "full":
                in_specs.append(pl.BlockSpec((hp, bn), lambda i, j: (0, j)))
                blocks.append(((hp, bn), jnp.bfloat16))
            else:
                in_specs.append(pl.BlockSpec((hp, rp), lambda i, j: (0, 0)))
                in_specs.append(pl.BlockSpec((rp, bn), lambda i, j: (0, j)))
                in_specs.append(pl.BlockSpec((1, bn), lambda i, j: (0, j)))
                blocks.extend([((hp, rp), jnp.bfloat16),
                               ((rp, bn), jnp.bfloat16),
                               ((1, bn), jnp.float32)])

        add_gate_up_specs(structure[0], gate_rp)
        add_gate_up_specs(structure[1], up_rp)

        if structure[2] == "full":
            in_specs.append(pl.BlockSpec((bn, hp), lambda i, j: (j, 0)))
            blocks.append(((bn, hp), jnp.bfloat16))
            acc_cols = hp
        else:
            in_specs.append(pl.BlockSpec((bn, down_rp), lambda i, j: (j, 0)))
            in_specs.append(pl.BlockSpec((down_rp, hp), lambda i, j: (0, 0)))
            in_specs.append(pl.BlockSpec((1, hp), lambda i, j: (0, 0)))
            blocks.extend([((bn, down_rp), jnp.bfloat16),
                           ((down_rp, hp), jnp.bfloat16),
                           ((1, hp), jnp.float32)])
            acc_cols = down_rp

        out_dtype = x.dtype
        out_spec = pl.BlockSpec((bm, hp), lambda i, j: (i, 0))

        scratch_shapes = [pltpu.VMEM((bm, acc_cols), jnp.float32)]
        scratch_bytes = _nbytes((bm, acc_cols), jnp.float32)
        if structure[0] == "lowrank":
            scratch_shapes.append(pltpu.VMEM((bm, gate_rp), jnp.bfloat16))
            scratch_bytes += _nbytes((bm, gate_rp), jnp.bfloat16)
        if structure[1] == "lowrank":
            scratch_shapes.append(pltpu.VMEM((bm, up_rp), jnp.bfloat16))
            scratch_bytes += _nbytes((bm, up_rp), jnp.bfloat16)

        # explicit scoped-VMEM budget: 2x (double-buffered tiles) + scratch, with headroom,
        # clamped to stay comfortably inside v7x's 64 MiB physical VMEM.
        est = sum(2 * _nbytes(sh, dt) for sh, dt in blocks)
        est += 2 * _nbytes((bm, hp), out_dtype)
        est += scratch_bytes
        vmem_limit = int(min(max(2 * est, 32 << 20), 56 << 20))

        out = pl.pallas_call(
            kernel,
            out_shape=jax.ShapeDtypeStruct((mp, hp), out_dtype),
            grid_spec=pltpu.PrefetchScalarGridSpec(
                num_scalar_prefetch=0,
                grid=grid,
                in_specs=in_specs,
                out_specs=out_spec,
                scratch_shapes=scratch_shapes,
            ),
            compiler_params=pltpu.CompilerParams(
                dimension_semantics=("parallel", "arbitrary"),
                vmem_limit_bytes=vmem_limit,
            ),
        )(x_pad, *padded)

        return out[:m, :h].reshape(b, s, h)

    # ------------------------------------------------------------------- reference
    # Pure-JAX reference mirroring the kernel's bf16 rounding points (f32 math otherwise).

    def reference(x):
        b, s, h = x.shape
        xf = x.reshape(b * s, h).astype(jnp.bfloat16).astype(jnp.float32)

        def gate_up(kind, prm):
            if kind == "full":
                (w,) = prm
                return xf @ w.astype(jnp.float32)
            w1, w2, bias = prm
            t = (xf @ w1.astype(jnp.float32)).astype(jnp.bfloat16).astype(jnp.float32)
            return t @ w2.astype(jnp.float32) + bias

        g = gate_up(structure[0], raw[0])
        u = gate_up(structure[1], raw[1])
        hmid = (jax.nn.silu(g) * u).astype(jnp.bfloat16).astype(jnp.float32)

        if structure[2] == "full":
            (w,) = raw[2]
            d = hmid @ w.astype(jnp.float32)
        else:
            w1, w2, bias = raw[2]
            t = (hmid @ w1.astype(jnp.float32)).astype(jnp.bfloat16).astype(jnp.float32)
            d = t @ w2.astype(jnp.float32) + bias
        return d.reshape(b, s, h).astype(x.dtype)

    return forward, reference


# ----------------------------------------------------------------------------- test

if __name__ == "__main__":
    key = jax.random.PRNGKey(0)
    kp1, kp2, kx = jax.random.split(key, 3)

    # Small shapes (hidden not a multiple of 128, intermediate not a multiple of the tile)
    # so the padding / multi-tile reduction paths are all exercised.
    hidden_size = 96
    intermediate_size = 352
    batch, seq = 2, 16

    # config 1: low-rank gate, full up, low-rank down
    fwd1, ref1 = make_llama_mlp(hidden_size, intermediate_size,
                                [1.0, 1.0, 0.5, 1.0, 0.5], kp1,
                                block_m=16, block_n=128)
    # config 2: full gate, low-rank up, full down
    fwd2, ref2 = make_llama_mlp(hidden_size, intermediate_size,
                                [1.0, 1.0, 1.0, 0.5, 1.0], kp2,
                                block_m=16, block_n=128)

    x = jax.random.normal(kx, (batch, seq, hidden_size), dtype=jnp.float32)

    for fwd, ref in ((fwd1, ref1), (fwd2, ref2)):
        out = fwd(x)
        jax.block_until_ready(out)
        r = ref(x)
        assert out.shape == (batch, seq, hidden_size)
        assert jnp.allclose(out, r, atol=1e-2, rtol=1e-2), \
            f"mismatch: max abs err {jnp.max(jnp.abs(out - r))}"

    print("KERNEL_OK")
</pallas_src>

<mosaic_0001>
module attributes {stable_mosaic.version = 11 : i64} {
  func.func @kernel(%arg0: i32, %arg1: i32, %arg2: memref<16x128xbf16, #tpu.memory_space<vmem>>, %arg3: memref<128x128xbf16, #tpu.memory_space<vmem>>, %arg4: memref<128x128xbf16, #tpu.memory_space<vmem>>, %arg5: memref<1x128xf32, #tpu.memory_space<vmem>>, %arg6: memref<128x128xbf16, #tpu.memory_space<vmem>>, %arg7: memref<128x128xbf16, #tpu.memory_space<vmem>>, %arg8: memref<128x128xbf16, #tpu.memory_space<vmem>>, %arg9: memref<1x128xf32, #tpu.memory_space<vmem>>, %arg10: memref<16x128xf32, #tpu.memory_space<vmem>>, %arg11: memref<16x128xf32, #tpu.memory_space<vmem>>, %arg12: memref<16x128xbf16, #tpu.memory_space<vmem>>) attributes {dimension_semantics = [#tpu.dimension_semantics<parallel>, #tpu.dimension_semantics<arbitrary>], iteration_bounds = array<i64: 2, 3>, scalar_prefetch = 0 : i64, scratch_operands = 2 : i64, tpu.core_type = #tpu.core_type<tc>, window_params = [{transform_indices = @transform_0, window_bounds = array<i64: 16, 128>}, {pipeline_mode = #tpu.pipeline_mode<synchronous>, transform_indices = @transform_1, window_bounds = array<i64: 128, 128>}, {transform_indices = @transform_2, window_bounds = array<i64: 128, 128>}, {transform_indices = @transform_3, window_bounds = array<i64: 1, 128>}, {transform_indices = @transform_4, window_bounds = array<i64: 128, 128>}, {transform_indices = @transform_5, window_bounds = array<i64: 128, 128>}, {pipeline_mode = #tpu.pipeline_mode<synchronous>, transform_indices = @transform_6, window_bounds = array<i64: 128, 128>}, {pipeline_mode = #tpu.pipeline_mode<synchronous>, transform_indices = @transform_7, window_bounds = array<i64: 1, 128>}, {transform_indices = @transform_8, window_bounds = array<i64: 16, 128>}]} {
    %c0_i32 = arith.constant 0 : i32
    %0 = arith.cmpi eq, %arg1, %c0_i32 : i32
    %1 = arith.extui %0 : i1 to i32
    %c0_i32_0 = arith.constant 0 : i32
    %2 = arith.cmpi ne, %1, %c0_i32_0 : i32
    scf.if %2 {
      %cst_20 = arith.constant 0.000000e+00 : f32
      %28 = vector.broadcast %cst_20 : f32 to vector<16x128xf32>
      %c0_21 = arith.constant 0 : index
      %c0_22 = arith.constant 0 : index
      %29 = vector.load %arg11[%c0_21, %c0_22] : memref<16x128xf32, #tpu.memory_space<vmem>>, vector<16x128xf32>
      tpu.vector_store %arg11[%c0_21, %c0_22], %28 {strides = array<i32>} : memref<16x128xf32, #tpu.memory_space<vmem>>, vector<16x128xf32>,
      %c0_23 = arith.constant 0 : index
      %c0_24 = arith.constant 0 : index
      %30 = vector.load %arg2[%c0_23, %c0_24] : memref<16x128xbf16, #tpu.memory_space<vmem>>, vector<16x128xbf16>
      %c0_25 = arith.constant 0 : index
      %c0_26 = arith.constant 0 : index
      %31 = vector.load %arg3[%c0_25, %c0_26] : memref<128x128xbf16, #tpu.memory_space<vmem>>, vector<128x128xbf16>
      %cst_27 = arith.constant dense<0.000000e+00> : vector<16x128xf32>
      %32 = tpu.matmul %30, %31, %cst_27 {dimension_numbers = #tpu.dot_dimension_numbers<[1], [0], [0], [1], [0, 0, 1, 1], [], []>} : vector<16x128xbf16>, vector<128x128xbf16>, vector<16x128xf32> -> vector<16x128xf32>
      %33 = arith.truncf %32 : vector<16x128xf32> to vector<16x128xbf16>
      %c0_28 = arith.constant 0 : index
      %c0_29 = arith.constant 0 : index
      %34 = vector.load %arg12[%c0_28, %c0_29] : memref<16x128xbf16, #tpu.memory_space<vmem>>, vector<16x128xbf16>
      tpu.vector_store %arg12[%c0_28, %c0_29], %33 {strides = array<i32>} : memref<16x128xbf16, #tpu.memory_space<vmem>>, vector<16x128xbf16>,
    } else {
    }
    %c0 = arith.constant 0 : index
    %c0_1 = arith.constant 0 : index
    %3 = vector.load %arg12[%c0, %c0_1] : memref<16x128xbf16, #tpu.memory_space<vmem>>, vector<16x128xbf16>
    %c0_2 = arith.constant 0 : index
    %c0_3 = arith.constant 0 : index
    %4 = vector.load %arg4[%c0_2, %c0_3] : memref<128x128xbf16, #tpu.memory_space<vmem>>, vector<128x128xbf16>
    %cst = arith.constant dense<0.000000e+00> : vector<16x128xf32>
    %5 = tpu.matmul %3, %4, %cst {dimension_numbers = #tpu.dot_dimension_numbers<[1], [0], [0], [1], [0, 0, 1, 1], [], []>} : vector<16x128xbf16>, vector<128x128xbf16>, vector<16x128xf32> -> vector<16x128xf32>
    %c0_4 = arith.constant 0 : index
    %c0_5 = arith.constant 0 : index
    %6 = vector.load %arg5[%c0_4, %c0_5] : memref<1x128xf32, #tpu.memory_space<vmem>>, vector<1x128xf32>
    %7 = vector.broadcast %6 : vector<1x128xf32> to vector<16x128xf32>
    %8 = arith.addf %5, %7 : vector<16x128xf32>
    %c0_6 = arith.constant 0 : index
    %c0_7 = arith.constant 0 : index
    %9 = vector.load %arg2[%c0_6, %c0_7] : memref<16x128xbf16, #tpu.memory_space<vmem>>, vector<16x128xbf16>
    %c0_8 = arith.constant 0 : index
    %c0_9 = arith.constant 0 : index
    %10 = vector.load %arg6[%c0_8, %c0_9] : memref<128x128xbf16, #tpu.memory_space<vmem>>, vector<128x128xbf16>
    %cst_10 = arith.constant dense<0.000000e+00> : vector<16x128xf32>
    %11 = tpu.matmul %9, %10, %cst_10 {dimension_numbers = #tpu.dot_dimension_numbers<[1], [0], [0], [1], [0, 0, 1, 1], [], []>} : vector<16x128xbf16>, vector<128x128xbf16>, vector<16x128xf32> -> vector<16x128xf32>
    %12 = arith.negf %8 : vector<16x128xf32>
    %13 = math.exp %12 : vector<16x128xf32>
    %cst_11 = arith.constant 1.000000e+00 : f32
    %14 = vector.broadcast %cst_11 : f32 to vector<16x128xf32>
    %15 = arith.addf %14, %13 : vector<16x128xf32>
    %16 = arith.divf %14, %15 : vector<16x128xf32>
    %17 = arith.mulf %8, %16 : vector<16x128xf32>
    %18 = arith.mulf %17, %11 : vector<16x128xf32>
    %19 = arith.truncf %18 : vector<16x128xf32> to vector<16x128xbf16>
    %c0_12 = arith.constant 0 : index
    %c0_13 = arith.constant 0 : index
    %20 = vector.load %arg11[%c0_12, %c0_13] : memref<16x128xf32, #tpu.memory_space<vmem>>, vector<16x128xf32>
    %c0_14 = arith.constant 0 : index
    %c0_15 = arith.constant 0 : index
    %21 = vector.load %arg7[%c0_14, %c0_15] : memref<128x128xbf16, #tpu.memory_space<vmem>>, vector<128x128xbf16>
    %cst_16 = arith.constant dense<0.000000e+00> : vector<16x128xf32>
    %22 = tpu.matmul %19, %21, %cst_16 {dimension_numbers = #tpu.dot_dimension_numbers<[1], [0], [0], [1], [0, 0, 1, 1], [], []>} : vector<16x128xbf16>, vector<128x128xbf16>, vector<16x128xf32> -> vector<16x128xf32>
    %23 = arith.addf %20, %22 : vector<16x128xf32>
    %c0_17 = arith.constant 0 : index
    %c0_18 = arith.constant 0 : index
    %24 = vector.load %arg11[%c0_17, %c0_18] : memref<16x128xf32, #tpu.memory_space<vmem>>, vector<16x128xf32>
    tpu.vector_store %arg11[%c0_17, %c0_18], %23 {strides = array<i32>} : memref<16x128xf32, #tpu.memory_space<vmem>>, vector<16x128xf32>,
    %c2_i32 = arith.constant 2 : i32
    %25 = arith.cmpi eq, %arg1, %c2_i32 : i32
    %26 = arith.extui %25 : i1 to i32
    %c0_i32_19 = arith.constant 0 : i32
    %27 = arith.cmpi ne, %26, %c0_i32_19 : i32
    scf.if %27 {
      %c0_20 = arith.constant 0 : index
      %c0_21 = arith.constant 0 : index
      %28 = vector.load %arg11[%c0_20, %c0_21] : memref<16x128xf32, #tpu.memory_space<vmem>>, vector<16x128xf32>
      %29 = arith.truncf %28 : vector<16x128xf32> to vector<16x128xbf16>
      %c0_22 = arith.constant 0 : index
      %c0_23 = arith.constant 0 : index
      %30 = vector.load %arg8[%c0_22, %c0_23] : memref<128x128xbf16, #tpu.memory_space<vmem>>, vector<128x128xbf16>
      %cst_24 = arith.constant dense<0.000000e+00> : vector<16x128xf32>
      %31 = tpu.matmul %29, %30, %cst_24 {dimension_numbers = #tpu.dot_dimension_numbers<[1], [0], [0], [1], [0, 0, 1, 1], [], []>} : vector<16x128xbf16>, vector<128x128xbf16>, vector<16x128xf32> -> vector<16x128xf32>
      %c0_25 = arith.constant 0 : index
      %c0_26 = arith.constant 0 : index
      %32 = vector.load %arg9[%c0_25, %c0_26] : memref<1x128xf32, #tpu.memory_space<vmem>>, vector<1x128xf32>
      %33 = vector.broadcast %32 : vector<1x128xf32> to vector<16x128xf32>
      %34 = arith.addf %31, %33 : vector<16x128xf32>
      %c0_27 = arith.constant 0 : index
      %c0_28 = arith.constant 0 : index
      %35 = vector.load %arg10[%c0_27, %c0_28] : memref<16x128xf32, #tpu.memory_space<vmem>>, vector<16x128xf32>
      tpu.vector_store %arg10[%c0_27, %c0_28], %34 {strides = array<i32>} : memref<16x128xf32, #tpu.memory_space<vmem>>, vector<16x128xf32>,
    } else {
    }
    return
  }
  func.func @transform_0(%arg0: i32, %arg1: i32) -> (i32, i32) {
    %c0_i32 = arith.constant 0 : i32
    %c0_i32_0 = arith.constant 0 : i32
    return %arg0, %c0_i32 : i32, i32
  }
  func.func @transform_1(%arg0: i32, %arg1: i32) -> (i32, i32) {
    %c0_i32 = arith.constant 0 : i32
    %c0_i32_0 = arith.constant 0 : i32
    %c0_i32_1 = arith.constant 0 : i32
    return %c0_i32, %c0_i32_0 : i32, i32
  }
  func.func @transform_2(%arg0: i32, %arg1: i32) -> (i32, i32) {
    %c0_i32 = arith.constant 0 : i32
    %c0_i32_0 = arith.constant 0 : i32
    return %c0_i32, %arg1 : i32, i32
  }
  func.func @transform_3(%arg0: i32, %arg1: i32) -> (i32, i32) {
    %c0_i32 = arith.constant 0 : i32
    %c0_i32_0 = arith.constant 0 : i32
    return %c0_i32, %arg1 : i32, i32
  }
  func.func @transform_4(%arg0: i32, %arg1: i32) -> (i32, i32) {
    %c0_i32 = arith.constant 0 : i32
    %c0_i32_0 = arith.constant 0 : i32
    return %c0_i32, %arg1 : i32, i32
  }
  func.func @transform_5(%arg0: i32, %arg1: i32) -> (i32, i32) {
    %c0_i32 = arith.constant 0 : i32
    %c0_i32_0 = arith.constant 0 : i32
    return %arg1, %c0_i32 : i32, i32
  }
  func.func @transform_6(%arg0: i32, %arg1: i32) -> (i32, i32) {
    %c0_i32 = arith.constant 0 : i32
    %c0_i32_0 = arith.constant 0 : i32
    %c0_i32_1 = arith.constant 0 : i32
    return %c0_i32, %c0_i32_0 : i32, i32
  }
  func.func @transform_7(%arg0: i32, %arg1: i32) -> (i32, i32) {
    %c0_i32 = arith.constant 0 : i32
    %c0_i32_0 = arith.constant 0 : i32
    %c0_i32_1 = arith.constant 0 : i32
    return %c0_i32, %c0_i32_0 : i32, i32
  }
  func.func @transform_8(%arg0: i32, %arg1: i32) -> (i32, i32) {
    %c0_i32 = arith.constant 0 : i32
    %c0_i32_0 = arith.constant 0 : i32
    return %arg0, %c0_i32 : i32, i32
  }
}

</mosaic_0001>

<llo_original>
// kernel: tpu_custom_call.1
$region0: #{tpu_custom_call.1}
  #allocation0 [shape = 'u32[]', space=smem, size = 0x4, offset = 0x4, fixed_abs, tag = 'smem constant byte address 0x4 - core index']
  #allocation1 [shape = 'u32[72,128]{1,0:T(1,128)}', space=vmem, size = 0x9000, scoped, tag = 'internal scratch']
  #allocation2 [shape = 'f32[16,128]{1,0:T(8,128)}', space=vmem, size = 0x2000, scoped, tag = 'scratch operand']
  #allocation3 [shape = 'bf16[16,128]{1,0:T(8,128)(2,1)}', space=vmem, size = 0x1000, scoped, tag = 'scratch operand']
  %s0 = inlined_call_operand.hbm [shape: bf16[32,128], index: 0, kind: input, shape index: {}]
  %s1 = inlined_call_operand.hbm [shape: bf16[128,128], index: 1, kind: input, shape index: {}]
  %s2 = inlined_call_operand.hbm [shape: bf16[128,384], index: 2, kind: input, shape index: {}]
  %s3 = inlined_call_operand.hbm [shape: f32[1,384], index: 3, kind: input, shape index: {}]
  %s4 = inlined_call_operand.hbm [shape: bf16[128,384], index: 4, kind: input, shape index: {}]
  %s5 = inlined_call_operand.hbm [shape: bf16[384,128], index: 5, kind: input, shape index: {}]
  %s6 = inlined_call_operand.hbm [shape: bf16[128,128], index: 6, kind: input, shape index: {}]
  %s7 = inlined_call_operand.vmem [shape: f32[1,128], index: 7, kind: input, shape index: {}]
  %s8 = inlined_call_operand.hbm [shape: f32[32,128], index: 8, kind: output, shape index: {}]
  %s9 = sld [smem:[#allocation0]]
  $region101: #{tpu_custom_call.1} parent=0
    _
  %s11 = ssub.s32 1, %s9
  %s12 = scalar_select 0, %s11, %s9
  $region1: #{tpu_custom_call.1} parent=0
    #allocation4 [shape = 'u8[8192]{0}', space=vmem, size = 0x2000, scoped, tag = 'input window, operand 0']
    #allocation5 [shape = 's32[2]{0}', space=sflag, size = 0x8, scoped, tag = 'scoped memory for tpu_custom_call.1']
    #allocation6 [shape = 's32[2]{0}', space=sflag, size = 0x8, scoped, tag = 'scoped memory for tpu_custom_call.1']
    #allocation7 [shape = 'u8[32768]{0}', space=vmem, size = 0x8000, scoped, tag = 'input window, operand 1, single buffered']
    #allocation8 [shape = 's32[1]{0}', space=sflag, size = 0x4, scoped, tag = 'scoped memory for tpu_custom_call.1']
    #allocation9 [shape = 'u8[65536]{0}', space=vmem, size = 0x10000, scoped, tag = 'input window, operand 2']
    #allocation10 [shape = 'u8[1024]{0}', space=vmem, size = 0x400, scoped, tag = 'input window, operand 3']
    #allocation11 [shape = 'u8[65536]{0}', space=vmem, size = 0x10000, scoped, tag = 'input window, operand 4']
    #allocation12 [shape = 'u8[65536]{0}', space=vmem, size = 0x10000, scoped, tag = 'input window, operand 5']
    #allocation13 [shape = 'u8[32768]{0}', space=vmem, size = 0x8000, scoped, tag = 'input window, operand 6, single buffered']
    #allocation14 [shape = 'u8[16384]{0}', space=vmem, size = 0x4000, scoped, tag = 'output window, operand 0']
    %13 = vsyncpa [#allocation5], 0
    %s14 = scalar_lea.sflag [#allocation5], 1
    %15 = vsyncpa %s14, 0
    %16 = vsyncpa [#allocation8], 0
    %17 = vsyncpa [#allocation6], 0
    %s18 = scalar_lea.sflag [#allocation6], 1
    %19 = vsyncpa %s18, 0
    loop: start=0, step=1, limit=8
    $region2: #{tpu_custom_call.1} parent=1 // loop_pre_header
      _
    $region3: #{tpu_custom_call.1} parent=1 // loop_header
      %s21 = sphi 0, %s25
      %p22 = scmp.ge.s32.totalorder %s21, 8
      %s28 = sphi 0, %s40
      %s29 = sphi 0, %s36
      %s30 = sphi 0, %s28
      %s31 = sphi 0, %s29
      %s32 = sphi 0, %s30
      %s33 = sphi 0, %s31
      %s43 = sphi 0, %s45
      %s46 = sphi 0, %s43
      %s47 = sphi 0, %s46
      %s63 = sphi 0, %s47
      %s67 = sphi 0, %s67
      %s69 = sphi 0, %s67
      %s70 = sphi 0, %s69
      %s84 = sphi 0, %s70
      %s90 = sphi 0, %s92
      %s93 = sphi 0, %s90
      %s94 = sphi 0, %s93
      %s110 = sphi 0, %s94
      %s116 = sphi 0, %s118
      %s119 = sphi 0, %s116
      %s120 = sphi 0, %s119
      %s136 = sphi 0, %s120
      %s142 = sphi 0, %s144
      %s145 = sphi 0, %s142
      %s146 = sphi 0, %s145
      %s162 = sphi 0, %s146
      %s168 = sphi 0, %s170
      %s171 = sphi 0, %s168
      %s172 = sphi 0, %s171
      %s188 = sphi 0, %s172
      %s192 = sphi 0, %s192
      %s194 = sphi 0, %s192
      %s195 = sphi 0, %s194
      %s209 = sphi 0, %s195
      %s213 = sphi 0, %s213
      %s215 = sphi 0, %s213
      %s216 = sphi 0, %s215
      %s230 = sphi 0, %s216
      %s236 = sphi 0, %s238
      %s239 = sphi 0, %s236
      %s240 = sphi 0, %s239
      %s256 = sphi 0, %s240
    $region4: #{tpu_custom_call.1} parent=1 // loop_header_branch
      %24 = sbr.rel (%p22) target = $region8
    $region5: #{tpu_custom_call.1} parent=1 // loop_body
      %s26 = ssub.s32 %s21, 1
      %s27 = ssub.s32 %s21, 2
      %s34 = sadd.s32 1, %s29
      %p35 = scmp.ge.s32.totalorder %s34, 3
      %s36 = scalar_select %p35, 0, %s34
      %s37 = sadd.s32 1, %s28
      %s38 = scalar_select %p35, %s37, %s28
      %p39 = scmp.ge.s32.totalorder %s38, 2
      %s40 = scalar_select %p39, 0, %s38
      %s41 = ssub.s32 %s28, %s40
      %p42 = scmp.eq.s32.totalorder %s41, 0
      %s44 = sadd.s32 %s43, 1
      %s45 = scalar_select %p42, %s43, %s44
      %p48 = pneg %p42
      %p49 = scmp.eq.s32.totalorder %s21, 5
      %p50 = por %p48, %p49
      %p51 = scmp.ne.s32.totalorder %s43, %s46
      %p52 = scmp.eq.s32.totalorder %s21, 0
      %p53 = por %p51, %p52
      %p54 = scmp.ne.s32.totalorder %s43, %s46
      %p55 = scmp.eq.s32.totalorder %s26, 5
      %p56 = por %p54, %p55
      %p57 = scmp.ne.s32.totalorder %s46, %s47
      %p58 = scmp.eq.s32.totalorder %s26, 0
      %p59 = por %p57, %p58
      %p60 = scmp.ne.s32.totalorder %s46, %s47
      %p61 = scmp.eq.s32.totalorder %s27, 5
      %p62 = por %p60, %p61
      %p64 = scmp.ne.s32.totalorder %s47, %s63
      %p65 = scmp.eq.s32.totalorder %s27, 0
      %p66 = por %p64, %p65
      %s68 = sadd.s32 %s67, 1
      %p71 = scmp.eq.s32.totalorder %s21, 5
      %p72 = scmp.ne.s32.totalorder %s67, %s69
      %p73 = scmp.eq.s32.totalorder %s21, 0
      %p74 = por %p72, %p73
      %p75 = scmp.ne.s32.totalorder %s67, %s69
      %p76 = scmp.eq.s32.totalorder %s26, 5
      %p77 = por %p75, %p76
      %p78 = scmp.ne.s32.totalorder %s69, %s70
      %p79 = scmp.eq.s32.totalorder %s26, 0
      %p80 = por %p78, %p79
      %p81 = scmp.ne.s32.totalorder %s69, %s70
      %p82 = scmp.eq.s32.totalorder %s27, 5
      %p83 = por %p81, %p82
      %p85 = scmp.ne.s32.totalorder %s70, %s84
      %p86 = scmp.eq.s32.totalorder %s27, 0
      %p87 = por %p85, %p86
      %s88 = ssub.s32 %s29, %s36
      %p89 = scmp.eq.s32.totalorder %s88, 0
      %s91 = sadd.s32 %s90, 1
      %s92 = scalar_select %p89, %s90, %s91
      %p95 = pneg %p89
      %p96 = scmp.eq.s32.totalorder %s21, 5
      %p97 = por %p95, %p96
      %p98 = scmp.ne.s32.totalorder %s90, %s93
      %p99 = scmp.eq.s32.totalorder %s21, 0
      %p100 = por %p98, %p99
      %p101 = scmp.ne.s32.totalorder %s90, %s93
      %p102 = scmp.eq.s32.totalorder %s26, 5
      %p103 = por %p101, %p102
      %p104 = scmp.ne.s32.totalorder %s93, %s94
      %p105 = scmp.eq.s32.totalorder %s26, 0
      %p106 = por %p104, %p105
      %p107 = scmp.ne.s32.totalorder %s93, %s94
      %p108 = scmp.eq.s32.totalorder %s27, 5
      %p109 = por %p107, %p108
      %p111 = scmp.ne.s32.totalorder %s94, %s110
      %p112 = scmp.eq.s32.totalorder %s27, 0
      %p113 = por %p111, %p112
      %s114 = ssub.s32 %s29, %s36
      %p115 = scmp.eq.s32.totalorder %s114, 0
      %s117 = sadd.s32 %s116, 1
      %s118 = scalar_select %p115, %s116, %s117
      %p121 = pneg %p115
      %p122 = scmp.eq.s32.totalorder %s21, 5
      %p123 = por %p121, %p122
      %p124 = scmp.ne.s32.totalorder %s116, %s119
      %p125 = scmp.eq.s32.totalorder %s21, 0
      %p126 = por %p124, %p125
      %p127 = scmp.ne.s32.totalorder %s116, %s119
      %p128 = scmp.eq.s32.totalorder %s26, 5
      %p129 = por %p127, %p128
      %p130 = scmp.ne.s32.totalorder %s119, %s120
      %p131 = scmp.eq.s32.totalorder %s26, 0
      %p132 = por %p130, %p131
      %p133 = scmp.ne.s32.totalorder %s119, %s120
      %p134 = scmp.eq.s32.totalorder %s27, 5
      %p135 = por %p133, %p134
      %p137 = scmp.ne.s32.totalorder %s120, %s136
      %p138 = scmp.eq.s32.totalorder %s27, 0
      %p139 = por %p137, %p138
      %s140 = ssub.s32 %s29, %s36
      %p141 = scmp.eq.s32.totalorder %s140, 0
      %s143 = sadd.s32 %s142, 1
      %s144 = scalar_select %p141, %s142, %s143
      %p147 = pneg %p141
      %p148 = scmp.eq.s32.totalorder %s21, 5
      %p149 = por %p147, %p148
      %p150 = scmp.ne.s32.totalorder %s142, %s145
      %p151 = scmp.eq.s32.totalorder %s21, 0
      %p152 = por %p150, %p151
      %p153 = scmp.ne.s32.totalorder %s142, %s145
      %p154 = scmp.eq.s32.totalorder %s26, 5
      %p155 = por %p153, %p154
      %p156 = scmp.ne.s32.totalorder %s145, %s146
      %p157 = scmp.eq.s32.totalorder %s26, 0
      %p158 = por %p156, %p157
      %p159 = scmp.ne.s32.totalorder %s145, %s146
      %p160 = scmp.eq.s32.totalorder %s27, 5
      %p161 = por %p159, %p160
      %p163 = scmp.ne.s32.totalorder %s146, %s162
      %p164 = scmp.eq.s32.totalorder %s27, 0
      %p165 = por %p163, %p164
      %s166 = ssub.s32 %s29, %s36
      %p167 = scmp.eq.s32.totalorder %s166, 0
      %s169 = sadd.s32 %s168, 1
      %s170 = scalar_select %p167, %s168, %s169
      %p173 = pneg %p167
      %p174 = scmp.eq.s32.totalorder %s21, 5
      %p175 = por %p173, %p174
      %p176 = scmp.ne.s32.totalorder %s168, %s171
      %p177 = scmp.eq.s32.totalorder %s21, 0
      %p178 = por %p176, %p177
      %p179 = scmp.ne.s32.totalorder %s168, %s171
      %p180 = scmp.eq.s32.totalorder %s26, 5
      %p181 = por %p179, %p180
      %p182 = scmp.ne.s32.totalorder %s171, %s172
      %p183 = scmp.eq.s32.totalorder %s26, 0
      %p184 = por %p182, %p183
      %p185 = scmp.ne.s32.totalorder %s171, %s172
      %p186 = scmp.eq.s32.totalorder %s27, 5
      %p187 = por %p185, %p186
      %p189 = scmp.ne.s32.totalorder %s172, %s188
      %p190 = scmp.eq.s32.totalorder %s27, 0
      %p191 = por %p189, %p190
      %s193 = sadd.s32 %s192, 1
      %p196 = scmp.eq.s32.totalorder %s21, 5
      %p197 = scmp.ne.s32.totalorder %s192, %s194
      %p198 = scmp.eq.s32.totalorder %s21, 0
      %p199 = por %p197, %p198
      %p200 = scmp.ne.s32.totalorder %s192, %s194
      %p201 = scmp.eq.s32.totalorder %s26, 5
      %p202 = por %p200, %p201
      %p203 = scmp.ne.s32.totalorder %s194, %s195
      %p204 = scmp.eq.s32.totalorder %s26, 0
      %p205 = por %p203, %p204
      %p206 = scmp.ne.s32.totalorder %s194, %s195
      %p207 = scmp.eq.s32.totalorder %s27, 5
      %p208 = por %p206, %p207
      %p210 = scmp.ne.s32.totalorder %s195, %s209
      %p211 = scmp.eq.s32.totalorder %s27, 0
      %p212 = por %p210, %p211
      %s214 = sadd.s32 %s213, 1
      %p217 = scmp.eq.s32.totalorder %s21, 5
      %p218 = scmp.ne.s32.totalorder %s213, %s215
      %p219 = scmp.eq.s32.totalorder %s21, 0
      %p220 = por %p218, %p219
      %p221 = scmp.ne.s32.totalorder %s213, %s215
      %p222 = scmp.eq.s32.totalorder %s26, 5
      %p223 = por %p221, %p222
      %p224 = scmp.ne.s32.totalorder %s215, %s216
      %p225 = scmp.eq.s32.totalorder %s26, 0
      %p226 = por %p224, %p225
      %p227 = scmp.ne.s32.totalorder %s215, %s216
      %p228 = scmp.eq.s32.totalorder %s27, 5
      %p229 = por %p227, %p228
      %p231 = scmp.ne.s32.totalorder %s216, %s230
      %p232 = scmp.eq.s32.totalorder %s27, 0
      %p233 = por %p231, %p232
      %s234 = ssub.s32 %s28, %s40
      %p235 = scmp.eq.s32.totalorder %s234, 0
      %s237 = sadd.s32 %s236, 1
      %s238 = scalar_select %p235, %s236, %s237
      %p241 = pneg %p235
      %p242 = scmp.eq.s32.totalorder %s21, 5
      %p243 = por %p241, %p242
      %p244 = scmp.ne.s32.totalorder %s236, %s239
      %p245 = scmp.eq.s32.totalorder %s21, 0
      %p246 = por %p244, %p245
      %p247 = scmp.ne.s32.totalorder %s236, %s239
      %p248 = scmp.eq.s32.totalorder %s26, 5
      %p249 = por %p247, %p248
      %p250 = scmp.ne.s32.totalorder %s239, %s240
      %p251 = scmp.eq.s32.totalorder %s26, 0
      %p252 = por %p250, %p251
      %p253 = scmp.ne.s32.totalorder %s239, %s240
      %p254 = scmp.eq.s32.totalorder %s27, 5
      %p255 = por %p253, %p254
      %p257 = scmp.ne.s32.totalorder %s240, %s256
      %p258 = scmp.eq.s32.totalorder %s27, 0
      %p259 = por %p257, %p258
      %p260 = scmp.le.s32.totalorder 1, %s21
      %p261 = scmp.lt.s32.totalorder %s21, 7
      %p262 = pnand %p260, %p261
      %p263 = pneg %p262
      // Predicated region
      $region9: #{tpu_custom_call.1} parent=5 // pred_check
        _
      $region10: #{tpu_custom_call.1} parent=5 // pred_check_branch
        %265 = sbr.rel (%p262) target = $region12
      $region11: #{tpu_custom_call.1} parent=5 // pred_region
        %s266 = ssub.s32 %s21, 1
        // Predicated region
        $region13: #{tpu_custom_call.1} parent=11 // pred_check
          %p267 = pneg %p80
        $region14: #{tpu_custom_call.1} parent=11 // pred_check_branch
          %269 = sbr.rel (%p267) target = $region16
        $region15: #{tpu_custom_call.1} parent=11 // pred_region
          %271 = vsyncadd [#allocation8], 0
          %s272 = sshll.u32 %s1, 4
          %s273 = int_to_ptr.hbm [resolvable:$true] %s272
          %s274 = sshll.u32 [#allocation7], 4
          %s275 = int_to_ptr.vmem [resolvable:$true] %s274
          %280 = dma.hbm_to_vmem [thread:$0]  %s273, 1024, %s275, [#allocation8], 64, 64, 4
        $region16: #{tpu_custom_call.1} parent=11 // pred_fallthru
          _
        // Predicated region
        $region17: #{tpu_custom_call.1} parent=11 // pred_check
          %p281 = pneg %p205
        $region18: #{tpu_custom_call.1} parent=11 // pred_check_branch
          %283 = sbr.rel (%p281) target = $region20
        $region19: #{tpu_custom_call.1} parent=11 // pred_region
          %285 = vsyncadd [#allocation8], 0
          %s286 = sshll.u32 %s6, 4
          %s287 = int_to_ptr.hbm [resolvable:$true] %s286
          %s288 = sshll.u32 [#allocation13], 4
          %s289 = int_to_ptr.vmem [resolvable:$true] %s288
          %294 = dma.hbm_to_vmem [thread:$0]  %s287, 1024, %s289, [#allocation8], 64, 64, 4
        $region20: #{tpu_custom_call.1} parent=11 // pred_fallthru
          _
        // Predicated region
        $region21: #{tpu_custom_call.1} parent=11 // pred_check
          %p295 = pneg %p226
        $region22: #{tpu_custom_call.1} parent=11 // pred_check_branch
          %297 = sbr.rel (%p295) target = $region24
        $region23: #{tpu_custom_call.1} parent=11 // pred_region
          _
        $region24: #{tpu_custom_call.1} parent=11 // pred_fallthru
          _
      $region12: #{tpu_custom_call.1} parent=5 // pred_fallthru
        _
      %p298 = scmp.lt.s32.totalorder %s21, 6
      // Predicated region
      $region25: #{tpu_custom_call.1} parent=5 // pred_check
        %p299 = pneg %p298
      $region26: #{tpu_custom_call.1} parent=5 // pred_check_branch
        %301 = sbr.rel (%p299) target = $region28
      $region27: #{tpu_custom_call.1} parent=5 // pred_region
        // Predicated region
        $region29: #{tpu_custom_call.1} parent=27 // pred_check
          %p302 = pneg %p53
        $region30: #{tpu_custom_call.1} parent=27 // pred_check_branch
          %304 = sbr.rel (%p302) target = $region32
        $region31: #{tpu_custom_call.1} parent=27 // pred_region
          %s305 = sand.u32 %s21, 1
          %s306 = scalar_lea.sflag [#allocation5], %s305
          %s307 = sand.u32 %s43, 1
          %s308 = smul.addr %s307, 8
          %s309 = scalar_lea.vmem [#allocation4], %s308
          %s310 = smul.u32 2, %s28
          %312 = vsyncadd %s306, 0
          %s313 = smul.addr %s310, 4
          %s314 = scalar_lea.hbm %s0, %s313
          %s315 = sshll.u32 %s314, 4
          %s316 = int_to_ptr.hbm [resolvable:$true] %s315
          %s317 = sshll.u32 %s309, 4
          %s318 = int_to_ptr.vmem [resolvable:$true] %s317
          %323 = dma.hbm_to_vmem [thread:$0]  %s316, 128, %s318, %s306, 64, 64, 4
        $region32: #{tpu_custom_call.1} parent=27 // pred_fallthru
          _
        // Predicated region
        $region33: #{tpu_custom_call.1} parent=27 // pred_check
          %p324 = pneg %p100
        $region34: #{tpu_custom_call.1} parent=27 // pred_check_branch
          %326 = sbr.rel (%p324) target = $region36
        $region35: #{tpu_custom_call.1} parent=27 // pred_region
          %s327 = sand.u32 %s21, 1
          %s328 = scalar_lea.sflag [#allocation5], %s327
          %s329 = sand.u32 %s90, 1
          %s330 = smul.addr %s329, 64
          %s331 = scalar_lea.vmem [#allocation9], %s330
          %333 = vsyncadd %s328, 0
          %s334 = smul.addr %s29, 4
          %s335 = scalar_lea.hbm %s2, %s334
          %s336 = sshll.u32 %s335, 4
          %s337 = int_to_ptr.hbm [resolvable:$true] %s336
          %s338 = sshll.u32 %s331, 4
          %s339 = int_to_ptr.vmem [resolvable:$true] %s338
          %344 = dma.hbm_to_vmem [thread:$0]  %s337, 1024, %s339, %s328, 192, 64, 4
        $region36: #{tpu_custom_call.1} parent=27 // pred_fallthru
          _
        // Predicated region
        $region37: #{tpu_custom_call.1} parent=27 // pred_check
          %p345 = pneg %p126
        $region38: #{tpu_custom_call.1} parent=27 // pred_check_branch
          %347 = sbr.rel (%p345) target = $region40
        $region39: #{tpu_custom_call.1} parent=27 // pred_region
          %s348 = sand.u32 %s21, 1
          %s349 = scalar_lea.sflag [#allocation5], %s348
          %s350 = sand.u32 %s116, 1
          %s351 = scalar_lea.vmem [#allocation10], %s350
          %353 = vsyncadd %s349, 0
          %s354 = scalar_lea.hbm %s3, %s29
          %s356 = sshll.u32 %s354, 4
          %s357 = int_to_ptr.hbm [resolvable:$true] %s356
          %s358 = sshll.u32 %s351, 4
          %s359 = int_to_ptr.vmem [resolvable:$true] %s358
          %361 = dma.hbm_to_vmem [thread:$0]  %s357, 16, %s359, %s349
        $region40: #{tpu_custom_call.1} parent=27 // pred_fallthru
          _
        // Predicated region
        $region41: #{tpu_custom_call.1} parent=27 // pred_check
          %p362 = pneg %p152
        $region42: #{tpu_custom_call.1} parent=27 // pred_check_branch
          %364 = sbr.rel (%p362) target = $region44
        $region43: #{tpu_custom_call.1} parent=27 // pred_region
          %s365 = sand.u32 %s21, 1
          %s366 = scalar_lea.sflag [#allocation5], %s365
          %s367 = sand.u32 %s142, 1
          %s368 = smul.addr %s367, 64
          %s369 = scalar_lea.vmem [#allocation11], %s368
          %371 = vsyncadd %s366, 0
          %s372 = smul.addr %s29, 4
          %s373 = scalar_lea.hbm %s4, %s372
          %s374 = sshll.u32 %s373, 4
          %s375 = int_to_ptr.hbm [resolvable:$true] %s374
          %s376 = sshll.u32 %s369, 4
          %s377 = int_to_ptr.vmem [resolvable:$true] %s376
          %382 = dma.hbm_to_vmem [thread:$0]  %s375, 1024, %s377, %s366, 192, 64, 4
        $region44: #{tpu_custom_call.1} parent=27 // pred_fallthru
          _
        // Predicated region
        $region45: #{tpu_custom_call.1} parent=27 // pred_check
          %p383 = pneg %p178
        $region46: #{tpu_custom_call.1} parent=27 // pred_check_branch
          %385 = sbr.rel (%p383) target = $region48
        $region47: #{tpu_custom_call.1} parent=27 // pred_region
          %s386 = sand.u32 %s21, 1
          %s387 = scalar_lea.sflag [#allocation5], %s386
          %s388 = sand.u32 %s168, 1
          %s389 = smul.addr %s388, 64
          %s390 = scalar_lea.vmem [#allocation12], %s389
          %s391 = smul.u32 16, %s29
          %393 = vsyncadd %s387, 0
          %s394 = smul.addr %s391, 4
          %s395 = scalar_lea.hbm %s5, %s394
          %s396 = sshll.u32 %s395, 4
          %s397 = int_to_ptr.hbm [resolvable:$true] %s396
          %s398 = sshll.u32 %s390, 4
          %s399 = int_to_ptr.vmem [resolvable:$true] %s398
          %404 = dma.hbm_to_vmem [thread:$0]  %s397, 1024, %s399, %s387, 64, 64, 4
        $region48: #{tpu_custom_call.1} parent=27 // pred_fallthru
          _
      $region28: #{tpu_custom_call.1} parent=5 // pred_fallthru
        _
      %p405 = scmp.le.s32.totalorder 1, %s21
      %p406 = scmp.lt.s32.totalorder %s21, 7
      %p407 = pnand %p405, %p406
      %p408 = pneg %p407
      // Predicated region
      $region49: #{tpu_custom_call.1} parent=5 // pred_check
        _
      $region50: #{tpu_custom_call.1} parent=5 // pred_check_branch
        %410 = sbr.rel (%p407) target = $region52
      $region51: #{tpu_custom_call.1} parent=5 // pred_region
        %s411 = ssub.s32 %s21, 1
        %s412 = sand.u32 %s26, 1
        %s413 = scalar_lea.sflag [#allocation5], %s412
        %s414 = sand.u32 %s46, 1
        %s415 = smul.addr %s414, 8
        %s416 = scalar_lea.vmem [#allocation4], %s415
        // Predicated region
        $region53: #{tpu_custom_call.1} parent=51 // pred_check
          %p417 = pneg %p59
        $region54: #{tpu_custom_call.1} parent=51 // pred_check_branch
          %419 = sbr.rel (%p417) target = $region56
        $region55: #{tpu_custom_call.1} parent=51 // pred_region
          %421 = dma.done %s413, 128
        $region56: #{tpu_custom_call.1} parent=51 // pred_fallthru
          _
        // Predicated region
        $region57: #{tpu_custom_call.1} parent=51 // pred_check
          %p422 = pneg %p80
        $region58: #{tpu_custom_call.1} parent=51 // pred_check_branch
          %424 = sbr.rel (%p422) target = $region60
        $region59: #{tpu_custom_call.1} parent=51 // pred_region
          %426 = dma.done [#allocation8], 1024
        $region60: #{tpu_custom_call.1} parent=51 // pred_fallthru
          _
        %s427 = sand.u32 %s26, 1
        %s428 = scalar_lea.sflag [#allocation5], %s427
        %s429 = sand.u32 %s93, 1
        %s430 = smul.addr %s429, 64
        %s431 = scalar_lea.vmem [#allocation9], %s430
        // Predicated region
        $region61: #{tpu_custom_call.1} parent=51 // pred_check
          %p432 = pneg %p106
        $region62: #{tpu_custom_call.1} parent=51 // pred_check_branch
          %434 = sbr.rel (%p432) target = $region64
        $region63: #{tpu_custom_call.1} parent=51 // pred_region
          %436 = dma.done %s428, 1024
        $region64: #{tpu_custom_call.1} parent=51 // pred_fallthru
          _
        %s437 = sand.u32 %s26, 1
        %s438 = scalar_lea.sflag [#allocation5], %s437
        %s439 = sand.u32 %s119, 1
        %s440 = scalar_lea.vmem [#allocation10], %s439
        // Predicated region
        $region65: #{tpu_custom_call.1} parent=51 // pred_check
          %p441 = pneg %p132
        $region66: #{tpu_custom_call.1} parent=51 // pred_check_branch
          %443 = sbr.rel (%p441) target = $region68
        $region67: #{tpu_custom_call.1} parent=51 // pred_region
          %445 = dma.done %s438, 16
        $region68: #{tpu_custom_call.1} parent=51 // pred_fallthru
          _
        %s446 = sand.u32 %s26, 1
        %s447 = scalar_lea.sflag [#allocation5], %s446
        %s448 = sand.u32 %s145, 1
        %s449 = smul.addr %s448, 64
        %s450 = scalar_lea.vmem [#allocation11], %s449
        // Predicated region
        $region69: #{tpu_custom_call.1} parent=51 // pred_check
          %p451 = pneg %p158
        $region70: #{tpu_custom_call.1} parent=51 // pred_check_branch
          %453 = sbr.rel (%p451) target = $region72
        $region71: #{tpu_custom_call.1} parent=51 // pred_region
          %455 = dma.done %s447, 1024
        $region72: #{tpu_custom_call.1} parent=51 // pred_fallthru
          _
        %s456 = sand.u32 %s26, 1
        %s457 = scalar_lea.sflag [#allocation5], %s456
        %s458 = sand.u32 %s171, 1
        %s459 = smul.addr %s458, 64
        %s460 = scalar_lea.vmem [#allocation12], %s459
        // Predicated region
        $region73: #{tpu_custom_call.1} parent=51 // pred_check
          %p461 = pneg %p184
        $region74: #{tpu_custom_call.1} parent=51 // pred_check_branch
          %463 = sbr.rel (%p461) target = $region76
        $region75: #{tpu_custom_call.1} parent=51 // pred_region
          %465 = dma.done %s457, 1024
        $region76: #{tpu_custom_call.1} parent=51 // pred_fallthru
          _
        // Predicated region
        $region77: #{tpu_custom_call.1} parent=51 // pred_check
          %p466 = pneg %p205
        $region78: #{tpu_custom_call.1} parent=51 // pred_check_branch
          %468 = sbr.rel (%p466) target = $region80
        $region79: #{tpu_custom_call.1} parent=51 // pred_region
          %470 = dma.done [#allocation8], 1024
        $region80: #{tpu_custom_call.1} parent=51 // pred_fallthru
          _
        %s471 = sand.u32 %s26, 1
        %s472 = scalar_lea.sflag [#allocation5], %s471
        %s473 = sand.u32 %s46, 1
        %s474 = smul.addr %s473, 8
        %s475 = scalar_lea.vmem [#allocation4], %s474
        %p476 = pneg %p59
        %p477 = pneg %p56
        %p478 = pneg %p80
        %p479 = pneg %p77
        %s480 = sand.u32 %s26, 1
        %s481 = scalar_lea.sflag [#allocation5], %s480
        %s482 = sand.u32 %s93, 1
        %s483 = smul.addr %s482, 64
        %s484 = scalar_lea.vmem [#allocation9], %s483
        %p485 = pneg %p106
        %p486 = pneg %p103
        %s487 = sand.u32 %s26, 1
        %s488 = scalar_lea.sflag [#allocation5], %s487
        %s489 = sand.u32 %s119, 1
        %s490 = scalar_lea.vmem [#allocation10], %s489
        %p491 = pneg %p132
        %p492 = pneg %p129
        %s493 = sand.u32 %s26, 1
        %s494 = scalar_lea.sflag [#allocation5], %s493
        %s495 = sand.u32 %s145, 1
        %s496 = smul.addr %s495, 64
        %s497 = scalar_lea.vmem [#allocation11], %s496
        %p498 = pneg %p158
        %p499 = pneg %p155
        %s500 = sand.u32 %s26, 1
        %s501 = scalar_lea.sflag [#allocation5], %s500
        %s502 = sand.u32 %s171, 1
        %s503 = smul.addr %s502, 64
        %s504 = scalar_lea.vmem [#allocation12], %s503
        %p505 = pneg %p184
        %p506 = pneg %p181
        %p507 = pneg %p205
        %p508 = pneg %p202
        %p509 = pneg %p226
        %p510 = pneg %p223
        %p511 = pneg %p252
        %p512 = pneg %p249
        %s513 = sand.u32 %s239, 1
        %s514 = scalar_lea.sflag [#allocation6], %s513
        %s515 = sand.u32 %s239, 1
        %s516 = smul.addr %s515, 16
        %s517 = scalar_lea.vmem [#allocation14], %s516
        %s518 = smul.u32 2, %s30
        %s519 = smul.u32 16, %s31
        %s520 = smul.u32 2, %s30
        %p521 = scmp.eq.s32.totalorder %s31, 0
        // Predicated region
        $region81: #{tpu_custom_call.1} parent=51 // pred_check
          %p522 = pneg %p521
        $region82: #{tpu_custom_call.1} parent=51 // pred_check_branch
          %524 = sbr.rel (%p522) target = $region84
        $region83: #{tpu_custom_call.1} parent=51 // pred_region
          %525 = vst [vmem:[#allocation2] sm:$0xff] 0.0
          %526 = vst [vmem:[#allocation2 + $0x8] sm:$0xff] 0.0
          %v527 = vld [vmem:[%s416] sm:$0xf]
          %v528 = vld [vmem:[%s416 + $0x4] sm:$0xf]
          %v529 = vld [vmem:[#allocation7] sm:$0xf]
          %v530 = vld [vmem:[#allocation7 + $0x4] sm:$0xf]
          %v531 = vld [vmem:[#allocation7 + $0x8] sm:$0xf]
          %v532 = vld [vmem:[#allocation7 + $0xc] sm:$0xf]
          %v533 = vld [vmem:[#allocation7 + $0x10] sm:$0xf]
          %v534 = vld [vmem:[#allocation7 + $0x14] sm:$0xf]
          %v535 = vld [vmem:[#allocation7 + $0x18] sm:$0xf]
          %v536 = vld [vmem:[#allocation7 + $0x1c] sm:$0xf]
          %v537 = vld [vmem:[#allocation7 + $0x20] sm:$0xf]
          %v538 = vld [vmem:[#allocation7 + $0x24] sm:$0xf]
          %v539 = vld [vmem:[#allocation7 + $0x28] sm:$0xf]
          %v540 = vld [vmem:[#allocation7 + $0x2c] sm:$0xf]
          %v541 = vld [vmem:[#allocation7 + $0x30] sm:$0xf]
          %v542 = vld [vmem:[#allocation7 + $0x34] sm:$0xf]
          %v543 = vld [vmem:[#allocation7 + $0x38] sm:$0xf]
          %v544 = vld [vmem:[#allocation7 + $0x3c] sm:$0xf]
          %v547 = vunpack.c.l.b16 %v527
          %v548 = vunpack.c.l.b16 %v528
          %v549 = vpack.c.b16 %v548, %v547
          %v567 = vunpack.c.l.b16 %v529
          %v568 = vunpack.c.l.b16 %v530
          %v569 = vunpack.c.l.b16 %v531
          %v570 = vunpack.c.l.b16 %v532
          %v571 = vunpack.c.l.b16 %v533
          %v572 = vunpack.c.l.b16 %v534
          %v573 = vunpack.c.l.b16 %v535
          %v574 = vunpack.c.l.b16 %v536
          %v575 = vunpack.c.l.b16 %v537
          %v576 = vunpack.c.l.b16 %v538
          %v577 = vunpack.c.l.b16 %v539
          %v578 = vunpack.c.l.b16 %v540
          %v579 = vunpack.c.l.b16 %v541
          %v580 = vunpack.c.l.b16 %v542
          %v581 = vunpack.c.l.b16 %v543
          %v582 = vunpack.c.l.b16 %v544
          %v583 = vpack.c.b16 %v568, %v567
          %v584 = vpack.c.b16 %v570, %v569
          %v585 = vpack.c.b16 %v572, %v571
          %v586 = vpack.c.b16 %v574, %v573
          %v587 = vpack.c.b16 %v576, %v575
          %v588 = vpack.c.b16 %v578, %v577
          %v589 = vpack.c.b16 %v580, %v579
          %v590 = vpack.c.b16 %v582, %v581
          %599 = vmatpush.bf16.msra.mxu0 %v590
          %600 = vmatpush.bf16.msra.mxu0 %v589
          %601 = vmatpush.bf16.msra.mxu0 %v588
          %602 = vmatpush.bf16.msra.mxu0 %v587
          %603 = vmatpush.bf16.msra.mxu0 %v586
          %604 = vmatpush.bf16.msra.mxu0 %v585
          %605 = vmatpush.bf16.msra.mxu0 %v584
          %606 = vmatpush.bf16.msra.mxu0 %v583
          %607 = vmatmul.bf16.gmra.mxu0 %v549
          %v608 = vpop.f32.mrf.mxu0
          %v609 = vadd.f32 0.0, %v608
          %v610 = vpop.f32.mrf.mxu0
          %v611 = vadd.f32 0.0, %v610
          %612 = vdwg.mxu0
          %v613 = vpack.c.bf16 %v609, %v609
          %v614 = vpack.c.bf16 %v611, %v611
          %615 = vst [vmem:[#allocation3] sm:$0xf] %v613
          %616 = vst [vmem:[#allocation3 + $0x4] sm:$0xf] %v614
        $region84: #{tpu_custom_call.1} parent=51 // pred_fallthru
          _
        %v617 = vld [vmem:[#allocation3] sm:$0xf]
        %v618 = vld [vmem:[#allocation3 + $0x4] sm:$0xf]
        %v619 = vld [vmem:[%s431] sm:$0xf]
        %v620 = vld [vmem:[%s431 + $0x4] sm:$0xf]
        %v621 = vld [vmem:[%s431 + $0x8] sm:$0xf]
        %v622 = vld [vmem:[%s431 + $0xc] sm:$0xf]
        %v623 = vld [vmem:[%s431 + $0x10] sm:$0xf]
        %v624 = vld [vmem:[%s431 + $0x14] sm:$0xf]
        %v625 = vld [vmem:[%s431 + $0x18] sm:$0xf]
        %v626 = vld [vmem:[%s431 + $0x1c] sm:$0xf]
        %v627 = vld [vmem:[%s431 + $0x20] sm:$0xf]
        %v628 = vld [vmem:[%s431 + $0x24] sm:$0xf]
        %v629 = vld [vmem:[%s431 + $0x28] sm:$0xf]
        %v630 = vld [vmem:[%s431 + $0x2c] sm:$0xf]
        %v631 = vld [vmem:[%s431 + $0x30] sm:$0xf]
        %v632 = vld [vmem:[%s431 + $0x34] sm:$0xf]
        %v633 = vld [vmem:[%s431 + $0x38] sm:$0xf]
        %v634 = vld [vmem:[%s431 + $0x3c] sm:$0xf]
        %v635 = vld [vmem:[%s440] sm:$0x1]
        %v637 = vperm.slane %v635, 0
        %v641 = vunpack.c.l.b16 %v617
        %v642 = vunpack.c.l.b16 %v618
        %v643 = vpack.c.b16 %v642, %v641
        %v661 = vunpack.c.l.b16 %v619
        %v662 = vunpack.c.l.b16 %v620
        %v663 = vunpack.c.l.b16 %v621
        %v664 = vunpack.c.l.b16 %v622
        %v665 = vunpack.c.l.b16 %v623
        %v666 = vunpack.c.l.b16 %v624
        %v667 = vunpack.c.l.b16 %v625
        %v668 = vunpack.c.l.b16 %v626
        %v669 = vunpack.c.l.b16 %v627
        %v670 = vunpack.c.l.b16 %v628
        %v671 = vunpack.c.l.b16 %v629
        %v672 = vunpack.c.l.b16 %v630
        %v673 = vunpack.c.l.b16 %v631
        %v674 = vunpack.c.l.b16 %v632
        %v675 = vunpack.c.l.b16 %v633
        %v676 = vunpack.c.l.b16 %v634
        %v677 = vpack.c.b16 %v662, %v661
        %v678 = vpack.c.b16 %v664, %v663
        %v679 = vpack.c.b16 %v666, %v665
        %v680 = vpack.c.b16 %v668, %v667
        %v681 = vpack.c.b16 %v670, %v669
        %v682 = vpack.c.b16 %v672, %v671
        %v683 = vpack.c.b16 %v674, %v673
        %v684 = vpack.c.b16 %v676, %v675
        %693 = vmatpush.bf16.msra.mxu0 %v684
        %694 = vmatpush.bf16.msra.mxu0 %v683
        %695 = vmatpush.bf16.msra.mxu0 %v682
        %696 = vmatpush.bf16.msra.mxu0 %v681
        %697 = vmatpush.bf16.msra.mxu0 %v680
        %698 = vmatpush.bf16.msra.mxu0 %v679
        %699 = vmatpush.bf16.msra.mxu0 %v678
        %700 = vmatpush.bf16.msra.mxu0 %v677
        %701 = vmatmul.bf16.gmra.mxu0 %v643
        %v702 = vpop.f32.mrf.mxu0
        %v703 = vadd.f32 %v637, %v702
        %v704 = vpop.f32.mrf.mxu0
        %v705 = vadd.f32 %v637, %v704
        %706 = vdwg.mxu0
        %v707 = vld [vmem:[%s416] sm:$0xf]
        %v708 = vld [vmem:[%s416 + $0x4] sm:$0xf]
        %v709 = vld [vmem:[%s450] sm:$0xf]
        %v710 = vld [vmem:[%s450 + $0x4] sm:$0xf]
        %v711 = vld [vmem:[%s450 + $0x8] sm:$0xf]
        %v712 = vld [vmem:[%s450 + $0xc] sm:$0xf]
        %v713 = vld [vmem:[%s450 + $0x10] sm:$0xf]
        %v714 = vld [vmem:[%s450 + $0x14] sm:$0xf]
        %v715 = vld [vmem:[%s450 + $0x18] sm:$0xf]
        %v716 = vld [vmem:[%s450 + $0x1c] sm:$0xf]
        %v717 = vld [vmem:[%s450 + $0x20] sm:$0xf]
        %v718 = vld [vmem:[%s450 + $0x24] sm:$0xf]
        %v719 = vld [vmem:[%s450 + $0x28] sm:$0xf]
        %v720 = vld [vmem:[%s450 + $0x2c] sm:$0xf]
        %v721 = vld [vmem:[%s450 + $0x30] sm:$0xf]
        %v722 = vld [vmem:[%s450 + $0x34] sm:$0xf]
        %v723 = vld [vmem:[%s450 + $0x38] sm:$0xf]
        %v724 = vld [vmem:[%s450 + $0x3c] sm:$0xf]
        %v727 = vunpack.c.l.b16 %v707
        %v728 = vunpack.c.l.b16 %v708
        %v729 = vpack.c.b16 %v728, %v727
        %v747 = vunpack.c.l.b16 %v709
        %v748 = vunpack.c.l.b16 %v710
        %v749 = vunpack.c.l.b16 %v711
        %v750 = vunpack.c.l.b16 %v712
        %v751 = vunpack.c.l.b16 %v713
        %v752 = vunpack.c.l.b16 %v714
        %v753 = vunpack.c.l.b16 %v715
        %v754 = vunpack.c.l.b16 %v716
        %v755 = vunpack.c.l.b16 %v717
        %v756 = vunpack.c.l.b16 %v718
        %v757 = vunpack.c.l.b16 %v719
        %v758 = vunpack.c.l.b16 %v720
        %v759 = vunpack.c.l.b16 %v721
        %v760 = vunpack.c.l.b16 %v722
        %v761 = vunpack.c.l.b16 %v723
        %v762 = vunpack.c.l.b16 %v724
        %v763 = vpack.c.b16 %v748, %v747
        %v764 = vpack.c.b16 %v750, %v749
        %v765 = vpack.c.b16 %v752, %v751
        %v766 = vpack.c.b16 %v754, %v753
        %v767 = vpack.c.b16 %v756, %v755
        %v768 = vpack.c.b16 %v758, %v757
        %v769 = vpack.c.b16 %v760, %v759
        %v770 = vpack.c.b16 %v762, %v761
        %779 = vmatpush.bf16.msra.mxu0 %v770
        %780 = vmatpush.bf16.msra.mxu0 %v769
        %781 = vmatpush.bf16.msra.mxu0 %v768
        %782 = vmatpush.bf16.msra.mxu0 %v767
        %783 = vmatpush.bf16.msra.mxu0 %v766
        %784 = vmatpush.bf16.msra.mxu0 %v765
        %785 = vmatpush.bf16.msra.mxu0 %v764
        %786 = vmatpush.bf16.msra.mxu0 %v763
        %787 = vmatmul.bf16.gmra.mxu0 %v729
        %v788 = vpop.f32.mrf.mxu0
        %v789 = vadd.f32 0.0, %v788
        %v790 = vpop.f32.mrf.mxu0
        %v791 = vadd.f32 0.0, %v790
        %792 = vdwg.mxu0
        %v793 = vxor.u32 %v703, 2147483648
        %v794 = vxor.u32 %v705, 2147483648
        %v795 = vmul.f32 %v793, 1.442695
        %v796 = vpow.pop %v795
        %v797 = vmul.f32 %v794, 1.442695
        %v798 = vpow.pop %v797
        %v799 = vadd.f32 %v796, 1.0
        %v800 = vadd.f32 %v798, 1.0
        %v801 = vrcp.pop %v799
        %v802 = vmul.f32 %v799, %v801
        %v803 = vsub.f32 1.0, %v802
        %v804 = vmul.f32 %v801, %v803
        %v805 = vadd.f32 %v801, %v804
        %vm806 = vweird.f32 %v799
        %vm807 = vweird.f32 %v801
        %vm808 = vmor %vm806, %vm807
        %v809 = vsel %vm808, %v801, %v805
        %v810 = vand.u32 2147483647, %v799
        %vm811 = vcmp.eq.f32.partialorder %v810, 8.507059e+37
        %v812 = vand.u32 %v799, 2147483648
        %v813 = vor.u32 1.1754944e-38, %v812
        %v814 = vsel %vm811, %v813, %v809
        %v815 = vmul.f32 1.0, %v814
        %v816 = vrcp.pop %v800
        %v817 = vmul.f32 %v800, %v816
        %v818 = vsub.f32 1.0, %v817
        %v819 = vmul.f32 %v816, %v818
        %v820 = vadd.f32 %v816, %v819
        %vm821 = vweird.f32 %v800
        %vm822 = vweird.f32 %v816
        %vm823 = vmor %vm821, %vm822
        %v824 = vsel %vm823, %v816, %v820
        %v825 = vand.u32 2147483647, %v800
        %vm826 = vcmp.eq.f32.partialorder %v825, 8.507059e+37
        %v827 = vand.u32 %v800, 2147483648
        %v828 = vor.u32 1.1754944e-38, %v827
        %v829 = vsel %vm826, %v828, %v824
        %v830 = vmul.f32 1.0, %v829
        %v831 = vmul.f32 %v703, %v815
        %v832 = vmul.f32 %v705, %v830
        %v833 = vmul.f32 %v831, %v789
        %v834 = vmul.f32 %v832, %v791
        %v835 = vpack.c.bf16 %v834, %v833
        %v836 = vld [vmem:[#allocation2] sm:$0xff]
        %v837 = vld [vmem:[#allocation2 + $0x8] sm:$0xff]
        %v838 = vld [vmem:[%s460] sm:$0xf]
        %v839 = vld [vmem:[%s460 + $0x4] sm:$0xf]
        %v840 = vld [vmem:[%s460 + $0x8] sm:$0xf]
        %v841 = vld [vmem:[%s460 + $0xc] sm:$0xf]
        %v842 = vld [vmem:[%s460 + $0x10] sm:$0xf]
        %v843 = vld [vmem:[%s460 + $0x14] sm:$0xf]
        %v844 = vld [vmem:[%s460 + $0x18] sm:$0xf]
        %v845 = vld [vmem:[%s460 + $0x1c] sm:$0xf]
        %v846 = vld [vmem:[%s460 + $0x20] sm:$0xf]
        %v847 = vld [vmem:[%s460 + $0x24] sm:$0xf]
        %v848 = vld [vmem:[%s460 + $0x28] sm:$0xf]
        %v849 = vld [vmem:[%s460 + $0x2c] sm:$0xf]
        %v850 = vld [vmem:[%s460 + $0x30] sm:$0xf]
        %v851 = vld [vmem:[%s460 + $0x34] sm:$0xf]
        %v852 = vld [vmem:[%s460 + $0x38] sm:$0xf]
        %v853 = vld [vmem:[%s460 + $0x3c] sm:$0xf]
        %v870 = vunpack.c.l.b16 %v838
        %v871 = vunpack.c.l.b16 %v839
        %v872 = vunpack.c.l.b16 %v840
        %v873 = vunpack.c.l.b16 %v841
        %v874 = vunpack.c.l.b16 %v842
        %v875 = vunpack.c.l.b16 %v843
        %v876 = vunpack.c.l.b16 %v844
        %v877 = vunpack.c.l.b16 %v845
        %v878 = vunpack.c.l.b16 %v846
        %v879 = vunpack.c.l.b16 %v847
        %v880 = vunpack.c.l.b16 %v848
        %v881 = vunpack.c.l.b16 %v849
        %v882 = vunpack.c.l.b16 %v850
        %v883 = vunpack.c.l.b16 %v851
        %v884 = vunpack.c.l.b16 %v852
        %v885 = vunpack.c.l.b16 %v853
        %v886 = vpack.c.b16 %v871, %v870
        %v887 = vpack.c.b16 %v873, %v872
        %v888 = vpack.c.b16 %v875, %v874
        %v889 = vpack.c.b16 %v877, %v876
        %v890 = vpack.c.b16 %v879, %v878
        %v891 = vpack.c.b16 %v881, %v880
        %v892 = vpack.c.b16 %v883, %v882
        %v893 = vpack.c.b16 %v885, %v884
        %902 = vmatpush.bf16.msra.mxu0 %v893
        %903 = vmatpush.bf16.msra.mxu0 %v892
        %904 = vmatpush.bf16.msra.mxu0 %v891
        %905 = vmatpush.bf16.msra.mxu0 %v890
        %906 = vmatpush.bf16.msra.mxu0 %v889
        %907 = vmatpush.bf16.msra.mxu0 %v888
        %908 = vmatpush.bf16.msra.mxu0 %v887
        %909 = vmatpush.bf16.msra.mxu0 %v886
        %910 = vmatmul.bf16.gmra.mxu0 %v835
        %v911 = vpop.f32.mrf.mxu0
        %v912 = vadd.f32 0.0, %v911
        %v913 = vpop.f32.mrf.mxu0
        %v914 = vadd.f32 0.0, %v913
        %915 = vdwg.mxu0
        %v916 = vadd.f32 %v836, %v912
        %v917 = vadd.f32 %v837, %v914
        %918 = vst [vmem:[#allocation2] sm:$0xff] %v916
        %919 = vst [vmem:[#allocation2 + $0x8] sm:$0xff] %v917
        %p920 = scmp.eq.s32.totalorder %s31, 2
        // Predicated region
        $region85: #{tpu_custom_call.1} parent=51 // pred_check
          %p921 = pneg %p920
        $region86: #{tpu_custom_call.1} parent=51 // pred_check_branch
          %923 = sbr.rel (%p921) target = $region88
        $region87: #{tpu_custom_call.1} parent=51 // pred_region
          %v924 = vld [vmem:[#allocation2] sm:$0xff]
          %v925 = vld [vmem:[#allocation2 + $0x8] sm:$0xff]
          %v926 = vpack.c.bf16 %v925, %v924
          %v927 = vld [vmem:[#allocation13] sm:$0xf]
          %v928 = vld [vmem:[#allocation13 + $0x4] sm:$0xf]
          %v929 = vld [vmem:[#allocation13 + $0x8] sm:$0xf]
          %v930 = vld [vmem:[#allocation13 + $0xc] sm:$0xf]
          %v931 = vld [vmem:[#allocation13 + $0x10] sm:$0xf]
          %v932 = vld [vmem:[#allocation13 + $0x14] sm:$0xf]
          %v933 = vld [vmem:[#allocation13 + $0x18] sm:$0xf]
          %v934 = vld [vmem:[#allocation13 + $0x1c] sm:$0xf]
          %v935 = vld [vmem:[#allocation13 + $0x20] sm:$0xf]
          %v936 = vld [vmem:[#allocation13 + $0x24] sm:$0xf]
          %v937 = vld [vmem:[#allocation13 + $0x28] sm:$0xf]
          %v938 = vld [vmem:[#allocation13 + $0x2c] sm:$0xf]
          %v939 = vld [vmem:[#allocation13 + $0x30] sm:$0xf]
          %v940 = vld [vmem:[#allocation13 + $0x34] sm:$0xf]
          %v941 = vld [vmem:[#allocation13 + $0x38] sm:$0xf]
          %v942 = vld [vmem:[#allocation13 + $0x3c] sm:$0xf]
          %v943 = vld [vmem:[%s7] sm:$0x1]
          %v945 = vperm.slane %v943, 0
          %v963 = vunpack.c.l.b16 %v927
          %v964 = vunpack.c.l.b16 %v928
          %v965 = vunpack.c.l.b16 %v929
          %v966 = vunpack.c.l.b16 %v930
          %v967 = vunpack.c.l.b16 %v931
          %v968 = vunpack.c.l.b16 %v932
          %v969 = vunpack.c.l.b16 %v933
          %v970 = vunpack.c.l.b16 %v934
          %v971 = vunpack.c.l.b16 %v935
          %v972 = vunpack.c.l.b16 %v936
          %v973 = vunpack.c.l.b16 %v937
          %v974 = vunpack.c.l.b16 %v938
          %v975 = vunpack.c.l.b16 %v939
          %v976 = vunpack.c.l.b16 %v940
          %v977 = vunpack.c.l.b16 %v941
          %v978 = vunpack.c.l.b16 %v942
          %v979 = vpack.c.b16 %v964, %v963
          %v980 = vpack.c.b16 %v966, %v965
          %v981 = vpack.c.b16 %v968, %v967
          %v982 = vpack.c.b16 %v970, %v969
          %v983 = vpack.c.b16 %v972, %v971
          %v984 = vpack.c.b16 %v974, %v973
          %v985 = vpack.c.b16 %v976, %v975
          %v986 = vpack.c.b16 %v978, %v977
          %995 = vmatpush.bf16.msra.mxu0 %v986
          %996 = vmatpush.bf16.msra.mxu0 %v985
          %997 = vmatpush.bf16.msra.mxu0 %v984
          %998 = vmatpush.bf16.msra.mxu0 %v983
          %999 = vmatpush.bf16.msra.mxu0 %v982
          %1000 = vmatpush.bf16.msra.mxu0 %v981
          %1001 = vmatpush.bf16.msra.mxu0 %v980
          %1002 = vmatpush.bf16.msra.mxu0 %v979
          %1003 = vmatmul.bf16.gmra.mxu0 %v926
          %v1004 = vpop.f32.mrf.mxu0
          %v1005 = vadd.f32 %v945, %v1004
          %v1006 = vpop.f32.mrf.mxu0
          %v1007 = vadd.f32 %v945, %v1006
          %1008 = vdwg.mxu0
          %1009 = vst [vmem:[%s517] sm:$0xff] %v1005
          %1010 = vst [vmem:[%s517 + $0x8] sm:$0xff] %v1007
        $region88: #{tpu_custom_call.1} parent=51 // pred_fallthru
          _
        %s1011 = sand.u32 %s239, 1
        %s1012 = scalar_lea.sflag [#allocation6], %s1011
        %s1013 = sand.u32 %s239, 1
        %s1014 = smul.addr %s1013, 16
        %s1015 = scalar_lea.vmem [#allocation14], %s1014
        // Predicated region
        $region89: #{tpu_custom_call.1} parent=51 // pred_check
          %p1016 = pneg %p249
        $region90: #{tpu_custom_call.1} parent=51 // pred_check_branch
          %1018 = sbr.rel (%p1016) target = $region92
        $region91: #{tpu_custom_call.1} parent=51 // pred_region
          %s1019 = smul.u32 2, %s30
          %1021 = vsyncadd %s1012, 0
          %s1022 = smul.addr %s1019, 8
          %s1023 = scalar_lea.hbm %s8, %s1022
          %s1024 = sshll.u32 %s1015, 4
          %s1025 = int_to_ptr.vmem [resolvable:$true] %s1024
          %s1026 = sshll.u32 %s1023, 4
          %s1027 = int_to_ptr.hbm [resolvable:$true] %s1026
          %1032 = dma.vmem_to_hbm [thread:$0]  %s1025, 256, %s1027, %s1012, 128, 128, 8
        $region92: #{tpu_custom_call.1} parent=51 // pred_fallthru
          _
      $region52: #{tpu_custom_call.1} parent=5 // pred_fallthru
        _
      %p1033 = scmp.le.s32.totalorder 2, %s21
      // Predicated region
      $region93: #{tpu_custom_call.1} parent=5 // pred_check
        %p1034 = pneg %p1033
      $region94: #{tpu_custom_call.1} parent=5 // pred_check_branch
        %1036 = sbr.rel (%p1034) target = $region96
      $region95: #{tpu_custom_call.1} parent=5 // pred_region
        %s1037 = ssub.s32 %s21, 2
        // Predicated region
        $region97: #{tpu_custom_call.1} parent=95 // pred_check
          %p1038 = pneg %p255
        $region98: #{tpu_custom_call.1} parent=95 // pred_check_branch
          %1040 = sbr.rel (%p1038) target = $region100
        $region99: #{tpu_custom_call.1} parent=95 // pred_region
          %s1041 = sand.u32 %s240, 1
          %s1042 = scalar_lea.sflag [#allocation6], %s1041
          %s1043 = sand.u32 %s240, 1
          %s1044 = smul.addr %s1043, 16
          %s1045 = scalar_lea.vmem [#allocation14], %s1044
          %1047 = dma.done %s1042, 256
        $region100: #{tpu_custom_call.1} parent=95 // pred_fallthru
          _
      $region96: #{tpu_custom_call.1} parent=5 // pred_fallthru
        _
    $region6: #{tpu_custom_call.1} parent=1 // loop_footer
      %s25 = sadd.s32 1, %s21
    $region7: #{tpu_custom_call.1} parent=1 // loop_footer_branch
      %20 = sbr.rel target = $region3
    $region8: #{tpu_custom_call.1} parent=1 // loop_exit
      _
    %1048 = vsyncpa [#allocation5], 1
    %s1049 = scalar_lea.sflag [#allocation5], 1
    %1050 = vsyncpa %s1049, 1
    %1051 = vsyncpa [#allocation8], 1
    %1052 = vsyncpa [#allocation6], 1
    %s1053 = scalar_lea.sflag [#allocation6], 1
    %1054 = vsyncpa %s1053, 1

</llo_original>
